<compile_context>
chip_gen: v7x
topology: tpu7x:2x2x1
jax: 0.10.0
libtpu: 0.0.40
codegen_flags: <defaults>
</compile_context>

<pallas_src>
import jax
import jax.numpy as jnp
from jax.experimental import pallas as pl
from jax.experimental.pallas import tpu as pltpu

BASE = 32            # base_neuron_count
HALF = BASE // 2
BN_EPS = 1e-5        # nn.BatchNorm1d default eps


# ----------------------------------------------------------------------------
# Kernels
# ----------------------------------------------------------------------------

def _make_stats_kernel(tb, batch):
    """Pass 1: accumulate per-feature sum / sum-of-squares of h1 over the batch."""

    def kernel(x_ref, w1t_ref, b1_ref, mean_ref, rstd_ref):
        i = pl.program_id(0)

        @pl.when(i == 0)
        def _init():
            mean_ref[...] = jnp.zeros_like(mean_ref)
            rstd_ref[...] = jnp.zeros_like(rstd_ref)

        # h1 = W1 @ x_tile + b1  -> [BASE, tb]   (batch on lanes)
        h = jnp.dot(w1t_ref[...], x_ref[...],
                    preferred_element_type=jnp.float32) + b1_ref[...]

        # Mask out zero-padded batch columns so statistics use only real rows.
        col = i * tb + jax.lax.broadcasted_iota(jnp.int32, h.shape, 1)
        hm = jnp.where(col < batch, h, 0.0)

        mean_ref[...] += jnp.sum(hm, axis=1, keepdims=True)        # running sum
        rstd_ref[...] += jnp.sum(hm * hm, axis=1, keepdims=True)   # running sumsq

        @pl.when(i == pl.num_programs(0) - 1)
        def _finalize():
            inv_n = jnp.float32(1.0 / batch)
            m = mean_ref[...] * inv_n
            v = rstd_ref[...] * inv_n - m * m       # biased (training-mode) var
            mean_ref[...] = m
            rstd_ref[...] = jax.lax.rsqrt(v + BN_EPS)

    return kernel


def _fwd_kernel(x_ref, mean_ref, rstd_ref, w1t_ref, b1_ref, gamma_ref, beta_ref,
                w2t_ref, b2_ref, w3t_ref, b3_ref, w4c_ref, b4_ref, o_ref):
    """Pass 2: full forward on one batch tile (batch on the lane axis)."""
    # Linear 1: [BASE, D] @ [D, TB] + [BASE, 1]
    h = jnp.dot(w1t_ref[...], x_ref[...],
                preferred_element_type=jnp.float32) + b1_ref[...]

    # BatchNorm1d (training-mode, full-batch stats from pass 1) + ReLU
    h = (h - mean_ref[...]) * (rstd_ref[...] * gamma_ref[...]) + beta_ref[...]
    h = jnp.maximum(h, 0.0)

    # Linear 2 + ReLU: [BASE, BASE] @ [BASE, TB]
    h = jnp.dot(w2t_ref[...], h, preferred_element_type=jnp.float32) + b2_ref[...]
    h = jnp.maximum(h, 0.0)

    # Linear 3 + ReLU: [HALF, BASE] @ [BASE, TB]
    h = jnp.dot(w3t_ref[...], h, preferred_element_type=jnp.float32) + b3_ref[...]
    h = jnp.maximum(h, 0.0)

    # Linear 4 (16 -> 1): VPU multiply + sublane reduce instead of a N=1 matmul
    out = jnp.sum(h * w4c_ref[...], axis=0, keepdims=True) + b4_ref[...]  # [1, TB]
    o_ref[...] = out.astype(o_ref.dtype)


# ----------------------------------------------------------------------------
# Wrapper
# ----------------------------------------------------------------------------

def _round_up(x, m):
    return ((x + m - 1) // m) * m


def _choose_tb(batch, d):
    """Largest batch tile (multiple of 128, <=1024) whose double-buffered x tile
    stays well under the v7x scoped-VMEM default."""
    budget = 16 << 20                       # bytes for 2 x (D, TB) f32 buffers
    tb = 1024
    while tb > 128 and 2 * 4 * d * tb > budget:
        tb //= 2
    return min(tb, _round_up(batch, 128))


def _vmem_limit_bytes(d, tb):
    x_tile = 2 * d * tb * 4                 # double-buffered input tile
    out_tile = 2 * tb * 4                   # double-buffered output tile
    acts = 8 * BASE * tb * 4                # headroom for intermediates
    weights = 4 * (BASE * d + BASE * BASE + BASE * HALF
                   + 6 * BASE + 2 * HALF + 2)
    total = x_tile + out_tile + acts + weights + (2 << 20)
    return int(min(max(total, 8 << 20), 48 << 20))


def regression_forward(x, params, tile_batch=None):
    """x: [B, D] float32.  params: dict of weights (see init_params).

    tile_batch: optional batch-tile override (must be a multiple of 128)."""
    B, D = x.shape
    tb = int(tile_batch) if tile_batch is not None else _choose_tb(B, D)
    B_pad = _round_up(B, tb)
    num_tiles = B_pad // tb
    vmem = _vmem_limit_bytes(D, tb)

    # Batch-on-lanes layout: x -> [D, B_pad] (zero pad the batch).
    xT = jnp.pad(x.T, ((0, 0), (0, B_pad - B)))

    const2d = lambda i: (0, 0)
    w_bytes = 4 * (BASE * D + BASE * BASE + BASE * HALF
                   + 6 * BASE + 2 * HALF + 2)

    # ---- Pass 1: BatchNorm statistics over the full batch --------------------
    stats_cost = pl.CostEstimate(
        flops=int(2 * B_pad * D * BASE + 4 * B_pad * BASE),
        transcendentals=0,
        bytes_accessed=int(B_pad * D * 4 + w_bytes + 2 * BASE * 4),
    )
    mean, rstd = pl.pallas_call(
        _make_stats_kernel(tb, B),
        out_shape=(jax.ShapeDtypeStruct((BASE, 1), jnp.float32),
                   jax.ShapeDtypeStruct((BASE, 1), jnp.float32)),
        grid=(num_tiles,),
        in_specs=[
            pl.BlockSpec((D, tb), lambda i: (0, i)),      # x tile
            pl.BlockSpec((BASE, D), const2d),             # W1 (resident)
            pl.BlockSpec((BASE, 1), const2d),             # b1 (resident)
        ],
        out_specs=(pl.BlockSpec((BASE, 1), const2d),
                   pl.BlockSpec((BASE, 1), const2d)),
        compiler_params=pltpu.CompilerParams(
            dimension_semantics=("arbitrary",),           # accumulating output
            vmem_limit_bytes=vmem),
        cost_estimate=stats_cost,
    )(xT, params["w1t"], params["b1"])

    # ---- Pass 2: normalized forward pass -------------------------------------
    fwd_cost = pl.CostEstimate(
        flops=int(2 * B_pad * (D * BASE + BASE * BASE + BASE * HALF + HALF)
                  + 8 * B_pad * BASE),
        transcendentals=0,
        bytes_accessed=int(B_pad * D * 4 + B_pad * 4 + w_bytes + 2 * BASE * 4),
    )
    yT = pl.pallas_call(
        _fwd_kernel,
        out_shape=jax.ShapeDtypeStruct((1, B_pad), jnp.float32),
        grid=(num_tiles,),
        in_specs=[
            pl.BlockSpec((D, tb), lambda i: (0, i)),      # x tile
            pl.BlockSpec((BASE, 1), const2d),             # mean
            pl.BlockSpec((BASE, 1), const2d),             # rstd
            pl.BlockSpec((BASE, D), const2d),             # W1
            pl.BlockSpec((BASE, 1), const2d),             # b1
            pl.BlockSpec((BASE, 1), const2d),             # gamma
            pl.BlockSpec((BASE, 1), const2d),             # beta
            pl.BlockSpec((BASE, BASE), const2d),          # W2
            pl.BlockSpec((BASE, 1), const2d),             # b2
            pl.BlockSpec((HALF, BASE), const2d),          # W3
            pl.BlockSpec((HALF, 1), const2d),             # b3
            pl.BlockSpec((HALF, 1), const2d),             # w4 (column)
            pl.BlockSpec((1, 1), const2d),                # b4
        ],
        out_specs=pl.BlockSpec((1, tb), lambda i: (0, i)),  # lane-dense output slab
        compiler_params=pltpu.CompilerParams(
            dimension_semantics=("parallel",),            # shard tiles across TCs
            vmem_limit_bytes=vmem),
        cost_estimate=fwd_cost,
    )(xT, mean, rstd,
      params["w1t"], params["b1"], params["gamma"], params["beta"],
      params["w2t"], params["b2"], params["w3t"], params["b3"],
      params["w4c"], params["b4"])

    # Back to PyTorch layout [B, 1]; drop padded batch columns.
    return yT[0, :B].reshape(B, 1)


# ----------------------------------------------------------------------------
# Parameters & pure-JAX reference
# ----------------------------------------------------------------------------

def init_params(key, input_size):
    """Deterministic synthetic parameters (PyTorch-like uniform init ranges).

    Linear weights are stored in PyTorch [out, in] layout (what the transposed
    kernel consumes directly); biases/gamma/beta as [out, 1] columns."""
    ks = jax.random.split(key, 8)

    def lin(kw, kb, fan_in, fan_out):
        bound = 1.0 / (fan_in ** 0.5)
        w = jax.random.uniform(kw, (fan_out, fan_in), jnp.float32, -bound, bound)
        b = jax.random.uniform(kb, (fan_out, 1), jnp.float32, -bound, bound)
        return w, b

    w1t, b1 = lin(ks[0], ks[1], input_size, BASE)
    w2t, b2 = lin(ks[2], ks[3], BASE, BASE)
    w3t, b3 = lin(ks[4], ks[5], BASE, HALF)
    w4_row, b4 = lin(ks[6], ks[7], HALF, 1)
    return {
        "w1t": w1t, "b1": b1,
        "gamma": jnp.ones((BASE, 1), jnp.float32),   # BatchNorm1d weight init
        "beta": jnp.zeros((BASE, 1), jnp.float32),   # BatchNorm1d bias init
        "w2t": w2t, "b2": b2,
        "w3t": w3t, "b3": b3,
        "w4c": w4_row.T,                             # [HALF, 1]
        "b4": b4,                                    # [1, 1]
    }


def regression_forward_ref(x, p):
    """Pure-JAX reference (standard [B, D] layout)."""
    h = x @ p["w1t"].T + p["b1"].T
    mean = jnp.mean(h, axis=0, keepdims=True)
    var = jnp.mean((h - mean) ** 2, axis=0, keepdims=True)
    h = (h - mean) / jnp.sqrt(var + BN_EPS) * p["gamma"].T + p["beta"].T
    h = jnp.maximum(h, 0.0)
    h = jnp.maximum(h @ p["w2t"].T + p["b2"].T, 0.0)
    h = jnp.maximum(h @ p["w3t"].T + p["b3"].T, 0.0)
    return h @ p["w4c"] + p["b4"]


# ----------------------------------------------------------------------------

if __name__ == "__main__":
    key = jax.random.PRNGKey(0)
    k_x, k_p, k_x2 = jax.random.split(key, 3)

    # Primary small test (matches the module's expected usage).
    batch, input_size = 8, 16
    x = jax.random.normal(k_x, (batch, input_size), jnp.float32)
    params = init_params(k_p, input_size)

    out = jax.block_until_ready(regression_forward(x, params))
    ref = regression_forward_ref(x, params)
    assert out.shape == (batch, 1)
    assert jnp.allclose(out, ref, atol=2e-4, rtol=2e-4), (
        float(jnp.max(jnp.abs(out - ref))))

    # Secondary test: multi-tile grid + batch padding/masking path.
    batch2 = 300
    x2 = jax.random.normal(k_x2, (batch2, input_size), jnp.float32)
    out2 = jax.block_until_ready(regression_forward(x2, params, tile_batch=128))
    ref2 = regression_forward_ref(x2, params)
    assert out2.shape == (batch2, 1)
    assert jnp.allclose(out2, ref2, atol=2e-4, rtol=2e-4), (
        float(jnp.max(jnp.abs(out2 - ref2))))

    print("KERNEL_OK")
</pallas_src>

<mosaic_0001>
module attributes {stable_mosaic.version = 11 : i64} {
  func.func @kernel(%arg0: i32, %arg1: memref<16x128xf32, #tpu.memory_space<vmem>>, %arg2: memref<32x16xf32, #tpu.memory_space<vmem>>, %arg3: memref<32x1xf32, #tpu.memory_space<vmem>>, %arg4: memref<32x1xf32, #tpu.memory_space<vmem>>, %arg5: memref<32x1xf32, #tpu.memory_space<vmem>>) attributes {dimension_semantics = [#tpu.dimension_semantics<arbitrary>], iteration_bounds = array<i64: 1>, scalar_prefetch = 0 : i64, scratch_operands = 0 : i64, tpu.core_type = #tpu.core_type<tc>, window_params = [{transform_indices = @transform_0, window_bounds = array<i64: 16, 128>}, {pipeline_mode = #tpu.pipeline_mode<synchronous>, transform_indices = @transform_1, window_bounds = array<i64: 32, 16>}, {pipeline_mode = #tpu.pipeline_mode<synchronous>, transform_indices = @transform_2, window_bounds = array<i64: 32, 1>}, {pipeline_mode = #tpu.pipeline_mode<synchronous>, transform_indices = @transform_3, window_bounds = array<i64: 32, 1>}, {pipeline_mode = #tpu.pipeline_mode<synchronous>, transform_indices = @transform_4, window_bounds = array<i64: 32, 1>}]} {
    %c0_i32 = arith.constant 0 : i32
    %0 = arith.cmpi eq, %arg0, %c0_i32 : i32
    %1 = arith.extui %0 : i1 to i32
    %c0_i32_0 = arith.constant 0 : i32
    %2 = arith.cmpi ne, %1, %c0_i32_0 : i32
    scf.if %2 {
      %cst_19 = arith.constant 0.000000e+00 : f32
      %31 = vector.broadcast %cst_19 : f32 to vector<32x1xf32>
      %c0_20 = arith.constant 0 : index
      %c0_21 = arith.constant 0 : index
      %32 = vector.load %arg4[%c0_20, %c0_21] : memref<32x1xf32, #tpu.memory_space<vmem>>, vector<32x1xf32>
      tpu.vector_store %arg4[%c0_20, %c0_21], %31 {strides = array<i32>} : memref<32x1xf32, #tpu.memory_space<vmem>>, vector<32x1xf32>,
      %cst_22 = arith.constant 0.000000e+00 : f32
      %33 = vector.broadcast %cst_22 : f32 to vector<32x1xf32>
      %c0_23 = arith.constant 0 : index
      %c0_24 = arith.constant 0 : index
      %34 = vector.load %arg5[%c0_23, %c0_24] : memref<32x1xf32, #tpu.memory_space<vmem>>, vector<32x1xf32>
      tpu.vector_store %arg5[%c0_23, %c0_24], %33 {strides = array<i32>} : memref<32x1xf32, #tpu.memory_space<vmem>>, vector<32x1xf32>,
    } else {
    }
    %c0 = arith.constant 0 : index
    %c0_1 = arith.constant 0 : index
    %3 = vector.load %arg2[%c0, %c0_1] : memref<32x16xf32, #tpu.memory_space<vmem>>, vector<32x16xf32>
    %c0_2 = arith.constant 0 : index
    %c0_3 = arith.constant 0 : index
    %4 = vector.load %arg1[%c0_2, %c0_3] : memref<16x128xf32, #tpu.memory_space<vmem>>, vector<16x128xf32>
    %cst = arith.constant dense<0.000000e+00> : vector<32x128xf32>
    %5 = tpu.matmul %3, %4, %cst {dimension_numbers = #tpu.dot_dimension_numbers<[1], [0], [0], [1], [0, 0, 1, 1], [], []>} : vector<32x16xf32>, vector<16x128xf32>, vector<32x128xf32> -> vector<32x128xf32>
    %c0_4 = arith.constant 0 : index
    %c0_5 = arith.constant 0 : index
    %6 = vector.load %arg3[%c0_4, %c0_5] : memref<32x1xf32, #tpu.memory_space<vmem>>, vector<32x1xf32>
    %7 = vector.broadcast %6 : vector<32x1xf32> to vector<32x128xf32>
    %8 = arith.addf %5, %7 : vector<32x128xf32>
    %c128_i32 = arith.constant 128 : i32
    %9 = arith.muli %arg0, %c128_i32 : i32
    %10 = tpu.iota {dimensions = array<i32: 1>} : vector<32x128xi32>
    %11 = vector.broadcast %9 : i32 to vector<32x128xi32>
    %12 = arith.addi %11, %10 : vector<32x128xi32>
    %c8_i32 = arith.constant 8 : i32
    %13 = vector.broadcast %c8_i32 : i32 to vector<32x128xi32>
    %14 = arith.cmpi slt, %12, %13 : vector<32x128xi32>
    %cst_6 = arith.constant 0.000000e+00 : f32
    %15 = vector.broadcast %cst_6 : f32 to vector<32x128xf32>
    %16 = arith.select %14, %8, %15 : vector<32x128xi1>, vector<32x128xf32>
    %c0_7 = arith.constant 0 : index
    %c0_8 = arith.constant 0 : index
    %17 = vector.load %arg4[%c0_7, %c0_8] : memref<32x1xf32, #tpu.memory_space<vmem>>, vector<32x1xf32>
    %cst_9 = arith.constant dense<0.000000e+00> : vector<32xf32>
    %18 = vector.multi_reduction <add>, %16, %cst_9 [1] : vector<32x128xf32> to vector<32xf32>
    %19 = vector.shape_cast %18 : vector<32xf32> to vector<32x1xf32>
    %20 = arith.addf %17, %19 : vector<32x1xf32>
    %c0_10 = arith.constant 0 : index
    %c0_11 = arith.constant 0 : index
    %21 = vector.load %arg4[%c0_10, %c0_11] : memref<32x1xf32, #tpu.memory_space<vmem>>, vector<32x1xf32>
    tpu.vector_store %arg4[%c0_10, %c0_11], %20 {strides = array<i32>} : memref<32x1xf32, #tpu.memory_space<vmem>>, vector<32x1xf32>,
    %c0_12 = arith.constant 0 : index
    %c0_13 = arith.constant 0 : index
    %22 = vector.load %arg5[%c0_12, %c0_13] : memref<32x1xf32, #tpu.memory_space<vmem>>, vector<32x1xf32>
    %23 = arith.mulf %16, %16 : vector<32x128xf32>
    %cst_14 = arith.constant dense<0.000000e+00> : vector<32xf32>
    %24 = vector.multi_reduction <add>, %23, %cst_14 [1] : vector<32x128xf32> to vector<32xf32>
    %25 = vector.shape_cast %24 : vector<32xf32> to vector<32x1xf32>
    %26 = arith.addf %22, %25 : vector<32x1xf32>
    %c0_15 = arith.constant 0 : index
    %c0_16 = arith.constant 0 : index
    %27 = vector.load %arg5[%c0_15, %c0_16] : memref<32x1xf32, #tpu.memory_space<vmem>>, vector<32x1xf32>
    tpu.vector_store %arg5[%c0_15, %c0_16], %26 {strides = array<i32>} : memref<32x1xf32, #tpu.memory_space<vmem>>, vector<32x1xf32>,
    %c0_i32_17 = arith.constant 0 : i32
    %28 = arith.cmpi eq, %arg0, %c0_i32_17 : i32
    %29 = arith.extui %28 : i1 to i32
    %c0_i32_18 = arith.constant 0 : i32
    %30 = arith.cmpi ne, %29, %c0_i32_18 : i32
    scf.if %30 {
      %c0_19 = arith.constant 0 : index
      %c0_20 = arith.constant 0 : index
      %31 = vector.load %arg4[%c0_19, %c0_20] : memref<32x1xf32, #tpu.memory_space<vmem>>, vector<32x1xf32>
      %cst_21 = arith.constant 1.250000e-01 : f32
      %32 = vector.broadcast %cst_21 : f32 to vector<32x1xf32>
      %33 = arith.mulf %31, %32 : vector<32x1xf32>
      %c0_22 = arith.constant 0 : index
      %c0_23 = arith.constant 0 : index
      %34 = vector.load %arg5[%c0_22, %c0_23] : memref<32x1xf32, #tpu.memory_space<vmem>>, vector<32x1xf32>
      %cst_24 = arith.constant 1.250000e-01 : f32
      %35 = vector.broadcast %cst_24 : f32 to vector<32x1xf32>
      %36 = arith.mulf %34, %35 : vector<32x1xf32>
      %37 = arith.mulf %33, %33 : vector<32x1xf32>
      %38 = arith.subf %36, %37 : vector<32x1xf32>
      %c0_25 = arith.constant 0 : index
      %c0_26 = arith.constant 0 : index
      %39 = vector.load %arg4[%c0_25, %c0_26] : memref<32x1xf32, #tpu.memory_space<vmem>>, vector<32x1xf32>
      tpu.vector_store %arg4[%c0_25, %c0_26], %33 {strides = array<i32>} : memref<32x1xf32, #tpu.memory_space<vmem>>, vector<32x1xf32>,
      %cst_27 = arith.constant 9.99999974E-6 : f32
      %40 = vector.broadcast %cst_27 : f32 to vector<32x1xf32>
      %41 = arith.addf %38, %40 : vector<32x1xf32>
      %42 = math.rsqrt %41 : vector<32x1xf32>
      %c0_28 = arith.constant 0 : index
      %c0_29 = arith.constant 0 : index
      %43 = vector.load %arg5[%c0_28, %c0_29] : memref<32x1xf32, #tpu.memory_space<vmem>>, vector<32x1xf32>
      tpu.vector_store %arg5[%c0_28, %c0_29], %42 {strides = array<i32>} : memref<32x1xf32, #tpu.memory_space<vmem>>, vector<32x1xf32>,
    } else {
    }
    return
  }
  func.func @transform_0(%arg0: i32) -> (i32, i32) {
    %c0_i32 = arith.constant 0 : i32
    %c0_i32_0 = arith.constant 0 : i32
    return %c0_i32, %arg0 : i32, i32
  }
  func.func @transform_1(%arg0: i32) -> (i32, i32) {
    %c0_i32 = arith.constant 0 : i32
    %c0_i32_0 = arith.constant 0 : i32
    %c0_i32_1 = arith.constant 0 : i32
    return %c0_i32, %c0_i32_0 : i32, i32
  }
  func.func @transform_2(%arg0: i32) -> (i32, i32) {
    %c0_i32 = arith.constant 0 : i32
    %c0_i32_0 = arith.constant 0 : i32
    %c0_i32_1 = arith.constant 0 : i32
    return %c0_i32, %c0_i32_0 : i32, i32
  }
  func.func @transform_3(%arg0: i32) -> (i32, i32) {
    %c0_i32 = arith.constant 0 : i32
    %c0_i32_0 = arith.constant 0 : i32
    %c0_i32_1 = arith.constant 0 : i32
    return %c0_i32, %c0_i32_0 : i32, i32
  }
  func.func @transform_4(%arg0: i32) -> (i32, i32) {
    %c0_i32 = arith.constant 0 : i32
    %c0_i32_0 = arith.constant 0 : i32
    %c0_i32_1 = arith.constant 0 : i32
    return %c0_i32, %c0_i32_0 : i32, i32
  }
}

</mosaic_0001>

<llo_original>
// kernel: tpu_custom_call.1
$region0: #{tpu_custom_call.1}
  #allocation0 [shape = 'u32[]', space=smem, size = 0x4, offset = 0x4, fixed_abs, tag = 'smem constant byte address 0x4 - core index']
  #allocation1 [shape = 'u32[144,128]{1,0:T(1,128)}', space=vmem, size = 0x12000, scoped, tag = 'internal scratch']
  %s0 = inlined_call_operand.vmem [shape: f32[16,128], index: 0, kind: input, shape index: {}]
  %s1 = inlined_call_operand.vmem [shape: f32[32,16], index: 1, kind: input, shape index: {}]
  %s2 = inlined_call_operand.vmem [shape: f32[32,1], index: 2, kind: input, shape index: {}]
  %s3 = inlined_call_operand.vmem [shape: f32[32,1], index: 3, kind: output, shape index: {0}]
  %s4 = inlined_call_operand.vmem [shape: f32[32,1], index: 4, kind: output, shape index: {1}]
  %5 = xla_tuple %s3, %s4
  %s6 = sld [smem:[#allocation0]]
  $region38: #{tpu_custom_call.1} parent=0
    _
  %s8 = ssub.s32 1, %s6
  %s9 = scalar_select 0, %s8, %s6
  // Predicated region
  $region2: #{tpu_custom_call.1} parent=0 // pred_check
    _
  $region3: #{tpu_custom_call.1} parent=0 // pred_check_branch
    %11 = sbr.rel (0) target = $region5
  $region4: #{tpu_custom_call.1} parent=0 // pred_region
    _
  $region5: #{tpu_custom_call.1} parent=0 // pred_fallthru
    _
  // Predicated region
  $region6: #{tpu_custom_call.1} parent=0 // pred_check
    _
  $region7: #{tpu_custom_call.1} parent=0 // pred_check_branch
    %13 = sbr.rel (0) target = $region9
  $region8: #{tpu_custom_call.1} parent=0 // pred_region
    _
  $region9: #{tpu_custom_call.1} parent=0 // pred_fallthru
    _
  // Predicated region
  $region10: #{tpu_custom_call.1} parent=0 // pred_check
    _
  $region11: #{tpu_custom_call.1} parent=0 // pred_check_branch
    %15 = sbr.rel (0) target = $region13
  $region12: #{tpu_custom_call.1} parent=0 // pred_region
    _
  $region13: #{tpu_custom_call.1} parent=0 // pred_fallthru
    _
  %p16 = scmp.eq.s32.totalorder 0, 0
  // Predicated region
  $region14: #{tpu_custom_call.1} parent=0 // pred_check
    %p17 = pneg %p16
  $region15: #{tpu_custom_call.1} parent=0 // pred_check_branch
    %19 = sbr.rel (%p17) target = $region17
  $region16: #{tpu_custom_call.1} parent=0 // pred_region
    %vm20 = vcmask 7168
    %21 = vst.msk [vmem:[%s3] sm:$0xff] %vm20, 0.0
    %22 = vst.msk [vmem:[%s3 + $0x8] sm:$0xff] %vm20, 0.0
    %23 = vst.msk [vmem:[%s3 + $0x10] sm:$0xff] %vm20, 0.0
    %24 = vst.msk [vmem:[%s3 + $0x18] sm:$0xff] %vm20, 0.0
    %25 = vst.msk [vmem:[%s4] sm:$0xff] %vm20, 0.0
    %26 = vst.msk [vmem:[%s4 + $0x8] sm:$0xff] %vm20, 0.0
    %27 = vst.msk [vmem:[%s4 + $0x10] sm:$0xff] %vm20, 0.0
    %28 = vst.msk [vmem:[%s4 + $0x18] sm:$0xff] %vm20, 0.0
  $region17: #{tpu_custom_call.1} parent=0 // pred_fallthru
    _
  %v29 = vld [vmem:[%s1] sm:$0xff]
  %v30 = vld [vmem:[%s1 + $0x8] sm:$0xff]
  %v31 = vld [vmem:[%s1 + $0x10] sm:$0xff]
  %v32 = vld [vmem:[%s1 + $0x18] sm:$0xff]
  %v33 = vld [vmem:[%s0] sm:$0xff]
  %v34 = vld [vmem:[%s0 + $0x8] sm:$0xff]
  %v35 = vld [vmem:[%s2] sm:$0xff]
  %v36 = vld [vmem:[%s2 + $0x8] sm:$0xff]
  %v37 = vld [vmem:[%s2 + $0x10] sm:$0xff]
  %v38 = vld [vmem:[%s2 + $0x18] sm:$0xff]
  %40 = vset.pattern.permute.xlu0 0
  %41 = vperm.xlu0 %40, %v35
  %v42 = vpop.permute.xlu0 %41
  %45 = vset.pattern.permute.xlu0 0
  %46 = vperm.xlu0 %45, %v36
  %v47 = vpop.permute.xlu0 %46
  %50 = vset.pattern.permute.xlu0 0
  %51 = vperm.xlu0 %50, %v37
  %v52 = vpop.permute.xlu0 %51
  %55 = vset.pattern.permute.xlu0 0
  %56 = vperm.xlu0 %55, %v38
  %v57 = vpop.permute.xlu0 %56
  %vm59 = vcmask 130048
  %v61 = vsel %vm59, %v29, 0
  %v64 = vsel %vm59, %v30, 0
  %v67 = vsel %vm59, %v31, 0
  %v70 = vsel %vm59, %v32, 0
  %72 = vmatprep.subr.mxu0 0.0
  %73 = vmatpush1.msra.mxu0 %v33
  %74 = vmatprep.subr.mxu0 0.0
  %75 = vmatpush1.msra.mxu0 %v34
  %76 = vmatprep.subr.mxu0 0.0
  %77 = vmatpush1.msra.mxu0 0.0
  %78 = vmatprep.subr.mxu0 0.0
  %79 = vmatpush1.msra.mxu0 0.0
  %80 = vmatprep.subr.mxu0 0.0
  %81 = vmatpush1.msra.mxu0 0.0
  %82 = vmatprep.subr.mxu0 0.0
  %83 = vmatpush1.msra.mxu0 0.0
  %84 = vmatprep.subr.mxu0 0.0
  %85 = vmatpush1.msra.mxu0 0.0
  %86 = vmatprep.subr.mxu0 0.0
  %87 = vmatpush1.msra.mxu0 0.0
  %88 = vmatprep.subr.mxu0 0.0
  %89 = vmatpush1.msra.mxu0 0.0
  %90 = vmatprep.subr.mxu0 0.0
  %91 = vmatpush1.msra.mxu0 0.0
  %92 = vmatprep.subr.mxu0 0.0
  %93 = vmatpush1.msra.mxu0 0.0
  %94 = vmatprep.subr.mxu0 0.0
  %95 = vmatpush1.msra.mxu0 0.0
  %96 = vmatprep.subr.mxu0 0.0
  %97 = vmatpush1.msra.mxu0 0.0
  %98 = vmatprep.subr.mxu0 0.0
  %99 = vmatpush1.msra.mxu0 0.0
  %100 = vmatprep.subr.mxu0 0.0
  %101 = vmatpush1.msra.mxu0 0.0
  %102 = vmatprep.subr.mxu0 0.0
  %103 = vmatpush1.msra.mxu0 0.0
  %104 = vmatprep.subr.mxu0 0.0
  %105 = vmatpush1.msra.mxu0 0.0
  %106 = vmatprep.subr.mxu0 0.0
  %107 = vmatpush1.msra.mxu0 0.0
  %108 = vmatprep.subr.mxu0 0.0
  %109 = vmatpush1.msra.mxu0 0.0
  %110 = vmatprep.subr.mxu0 0.0
  %111 = vmatpush1.msra.mxu0 0.0
  %112 = vmatprep.subr.mxu0 0.0
  %113 = vmatpush1.msra.mxu0 0.0
  %114 = vmatprep.subr.mxu0 0.0
  %115 = vmatpush1.msra.mxu0 0.0
  %116 = vmatprep.subr.mxu0 0.0
  %117 = vmatpush1.msra.mxu0 0.0
  %118 = vmatprep.subr.mxu0 0.0
  %119 = vmatpush1.msra.mxu0 0.0
  %120 = vmatprep.subr.mxu0 0.0
  %121 = vmatpush1.msra.mxu0 0.0
  %122 = vmatprep.subr.mxu0 0.0
  %123 = vmatpush1.msra.mxu0 0.0
  %124 = vmatprep.subr.mxu0 0.0
  %125 = vmatpush1.msra.mxu0 0.0
  %126 = vmatprep.subr.mxu0 0.0
  %127 = vmatpush1.msra.mxu0 0.0
  %128 = vmatprep.subr.mxu0 0.0
  %129 = vmatpush1.msra.mxu0 0.0
  %130 = vmatprep.subr.mxu0 0.0
  %131 = vmatpush1.msra.mxu0 0.0
  %132 = vmatprep.subr.mxu0 0.0
  %133 = vmatpush1.msra.mxu0 0.0
  %134 = vmatprep.subr.mxu0 0.0
  %135 = vmatpush1.msra.mxu0 0.0
  %136 = vmatprep.mubr.f32.mxu0 0.0
  %137 = vmatmul.mubr.f32.gmra.mrb[0].mxu0 %v61
  %v138 = vpop.f32.mrb[0].mxu0
  %v139 = vadd.f32 %v42, %v138
  %v140 = vpop.f32.mrb[0].mxu0
  %141 = vmatprep.mubr.f32.mxu0 0.0
  %142 = vmatmul.mubr.f32.gmra.mrb[0].mxu0 %v64
  %v143 = vpop.f32.mrb[0].mxu0
  %v144 = vadd.f32 %v47, %v143
  %v145 = vpop.f32.mrb[0].mxu0
  %146 = vmatprep.mubr.f32.mxu0 0.0
  %147 = vmatmul.mubr.f32.gmra.mrb[0].mxu0 %v67
  %v148 = vpop.f32.mrb[0].mxu0
  %v149 = vadd.f32 %v52, %v148
  %v150 = vpop.f32.mrb[0].mxu0
  %151 = vmatprep.mubr.f32.mxu0 0.0
  %152 = vmatmul.mubr.f32.gmra.mrb[0].mxu0 %v70
  %v153 = vpop.f32.mrb[0].mxu0
  %v154 = vadd.f32 %v57, %v153
  %v155 = vpop.f32.mrb[0].mxu0
  %156 = vdwg.mxu0
  %s157 = smul.u32 0, 128
  %v158 = vlaneseq
  %v159 = vand.u32 %v158, 127
  %v160 = vstv %s157
  %v161 = vadd.s32 %v160, %v159
  %vm162 = vcmp.lt.s32.totalorder %v161, 8
  %v163 = vsel %vm162, %v139, 0.0
  %v164 = vsel %vm162, %v144, 0.0
  %v165 = vsel %vm162, %v149, 0.0
  %v166 = vsel %vm162, %v154, 0.0
  %v167 = vld [vmem:[%s3] sm:$0xff]
  %v168 = vld [vmem:[%s3 + $0x8] sm:$0xff]
  %v169 = vld [vmem:[%s3 + $0x10] sm:$0xff]
  %v170 = vld [vmem:[%s3 + $0x18] sm:$0xff]
  %171 = vadd.xlane.f32.xlu0 %v163
  %v172 = vpop.xlane.xlu0 %171
  %173 = vadd.xlane.f32.xlu0 %v164
  %v174 = vpop.xlane.xlu0 %173
  %175 = vadd.xlane.f32.xlu0 %v165
  %v176 = vpop.xlane.xlu0 %175
  %177 = vadd.xlane.f32.xlu0 %v166
  %v178 = vpop.xlane.xlu0 %177
  %v179 = vadd.f32 %v167, %v172
  %v180 = vadd.f32 %v168, %v174
  %v181 = vadd.f32 %v169, %v176
  %v182 = vadd.f32 %v170, %v178
  %vm183 = vcmask 7168
  %184 = vst.msk [vmem:[%s3] sm:$0xff] %vm183, %v179
  %185 = vst.msk [vmem:[%s3 + $0x8] sm:$0xff] %vm183, %v180
  %186 = vst.msk [vmem:[%s3 + $0x10] sm:$0xff] %vm183, %v181
  %187 = vst.msk [vmem:[%s3 + $0x18] sm:$0xff] %vm183, %v182
  %v188 = vld [vmem:[%s4] sm:$0xff]
  %v189 = vld [vmem:[%s4 + $0x8] sm:$0xff]
  %v190 = vld [vmem:[%s4 + $0x10] sm:$0xff]
  %v191 = vld [vmem:[%s4 + $0x18] sm:$0xff]
  %v192 = vmul.f32 %v163, %v163
  %v193 = vmul.f32 %v164, %v164
  %v194 = vmul.f32 %v165, %v165
  %v195 = vmul.f32 %v166, %v166
  %196 = vadd.xlane.f32.xlu0 %v192
  %v197 = vpop.xlane.xlu0 %196
  %198 = vadd.xlane.f32.xlu0 %v193
  %v199 = vpop.xlane.xlu0 %198
  %200 = vadd.xlane.f32.xlu0 %v194
  %v201 = vpop.xlane.xlu0 %200
  %202 = vadd.xlane.f32.xlu0 %v195
  %v203 = vpop.xlane.xlu0 %202
  %v204 = vadd.f32 %v188, %v197
  %v205 = vadd.f32 %v189, %v199
  %v206 = vadd.f32 %v190, %v201
  %v207 = vadd.f32 %v191, %v203
  %208 = vst.msk [vmem:[%s4] sm:$0xff] %vm183, %v204
  %209 = vst.msk [vmem:[%s4 + $0x8] sm:$0xff] %vm183, %v205
  %210 = vst.msk [vmem:[%s4 + $0x10] sm:$0xff] %vm183, %v206
  %211 = vst.msk [vmem:[%s4 + $0x18] sm:$0xff] %vm183, %v207
  // Predicated region
  $region18: #{tpu_custom_call.1} parent=0 // pred_check
    %p212 = pneg %p16
  $region19: #{tpu_custom_call.1} parent=0 // pred_check_branch
    %214 = sbr.rel (%p212) target = $region21
  $region20: #{tpu_custom_call.1} parent=0 // pred_region
    %v215 = vld [vmem:[%s3] sm:$0xff]
    %v216 = vld [vmem:[%s3 + $0x8] sm:$0xff]
    %v217 = vld [vmem:[%s3 + $0x10] sm:$0xff]
    %v218 = vld [vmem:[%s3 + $0x18] sm:$0xff]
    %v219 = vmul.f32 %v215, 0.125
    %v220 = vmul.f32 %v216, 0.125
    %v221 = vmul.f32 %v217, 0.125
    %v222 = vmul.f32 %v218, 0.125
    %v223 = vld [vmem:[%s4] sm:$0xff]
    %v224 = vld [vmem:[%s4 + $0x8] sm:$0xff]
    %v225 = vld [vmem:[%s4 + $0x10] sm:$0xff]
    %v226 = vld [vmem:[%s4 + $0x18] sm:$0xff]
    %v227 = vmul.f32 %v223, 0.125
    %v228 = vmul.f32 %v224, 0.125
    %v229 = vmul.f32 %v225, 0.125
    %v230 = vmul.f32 %v226, 0.125
    %v231 = vmul.f32 %v219, %v219
    %v232 = vmul.f32 %v220, %v220
    %v233 = vmul.f32 %v221, %v221
    %v234 = vmul.f32 %v222, %v222
    %v235 = vsub.f32 %v227, %v231
    %v236 = vsub.f32 %v228, %v232
    %v237 = vsub.f32 %v229, %v233
    %v238 = vsub.f32 %v230, %v234
    %239 = vst.msk [vmem:[%s3] sm:$0xff] %vm183, %v219
    %240 = vst.msk [vmem:[%s3 + $0x8] sm:$0xff] %vm183, %v220
    %241 = vst.msk [vmem:[%s3 + $0x10] sm:$0xff] %vm183, %v221
    %242 = vst.msk [vmem:[%s3 + $0x18] sm:$0xff] %vm183, %v222
    %v243 = vadd.f32 %v235, 1e-05
    %v244 = vadd.f32 %v236, 1e-05
    %v245 = vadd.f32 %v237, 1e-05
    %v246 = vadd.f32 %v238, 1e-05
    %v247 = vrsqrt.pop %v243
    %v248 = vrsqrt.pop %v244
    %v249 = vrsqrt.pop %v245
    %v250 = vrsqrt.pop %v246
    %251 = vst.msk [vmem:[%s4] sm:$0xff] %vm183, %v247
    %252 = vst.msk [vmem:[%s4 + $0x8] sm:$0xff] %vm183, %v248
    %253 = vst.msk [vmem:[%s4 + $0x10] sm:$0xff] %vm183, %v249
    %254 = vst.msk [vmem:[%s4 + $0x18] sm:$0xff] %vm183, %v250
  $region21: #{tpu_custom_call.1} parent=0 // pred_fallthru
    _
  // Predicated region
  $region22: #{tpu_custom_call.1} parent=0 // pred_check
    _
  $region23: #{tpu_custom_call.1} parent=0 // pred_check_branch
    %256 = sbr.rel (0) target = $region25
  $region24: #{tpu_custom_call.1} parent=0 // pred_region
    _
  $region25: #{tpu_custom_call.1} parent=0 // pred_fallthru
    _
  // Predicated region
  $region26: #{tpu_custom_call.1} parent=0 // pred_check
    _
  $region27: #{tpu_custom_call.1} parent=0 // pred_check_branch
    %258 = sbr.rel (0) target = $region29
  $region28: #{tpu_custom_call.1} parent=0 // pred_region
    _
  $region29: #{tpu_custom_call.1} parent=0 // pred_fallthru
    _
  // Predicated region
  $region30: #{tpu_custom_call.1} parent=0 // pred_check
    _
  $region31: #{tpu_custom_call.1} parent=0 // pred_check_branch
    %260 = sbr.rel (0) target = $region33
  $region32: #{tpu_custom_call.1} parent=0 // pred_region
    _
  $region33: #{tpu_custom_call.1} parent=0 // pred_fallthru
    _
  // Predicated region
  $region34: #{tpu_custom_call.1} parent=0 // pred_check
    _
  $region35: #{tpu_custom_call.1} parent=0 // pred_check_branch
    %262 = sbr.rel (0) target = $region37
  $region36: #{tpu_custom_call.1} parent=0 // pred_region
    _
  $region37: #{tpu_custom_call.1} parent=0 // pred_fallthru
    _

</llo_original>
